<compile_context>
chip_gen: v6e
topology: v6e:2x2x1
jax: 0.10.0
libtpu: 0.0.40
codegen_flags: <defaults>
</compile_context>

<pallas_src>
import functools

import jax
import jax.numpy as jnp
from jax.experimental import pallas as pl
from jax.experimental.pallas import tpu as pltpu

VMEM = pltpu.MemorySpace.VMEM
_OUT_PAD = 128            # lane-dense output slab; sliced to out_dim in wrapper
_NEG_INF = -1e30          # additive mask for non-edges (kept in f32)


# ----------------------------- fused forward kernel -------------------------
def _gat_fused_kernel(mask_feat_ref, diff_ref, adj_bias_ref,
                      w_in_ref, b_in_ref,
                      g1_w_ref, g1_b_ref,
                      g2_w_ref, g2_b_ref,
                      w_out_ref, b_out_ref,
                      o_ref,
                      x1_scr,
                      *, heads, c1, hidden):
    f32, bf16 = jnp.float32, jnp.bfloat16

    adj_bias = adj_bias_ref[...]                       # (N, N) f32: 0 / -1e30
    w_in, b_in = w_in_ref[...], b_in_ref[...]          # bf16 / f32
    w_out, b_out = w_out_ref[...], b_out_ref[...]      # bf16 / f32 (lane-padded)

    def input_linear(v_bf16):                          # Linear + LeakyReLU(0.01)
        y = jnp.dot(v_bf16, w_in, preferred_element_type=f32) + b_in
        return jnp.where(y > 0, y, f32(0.01) * y)

    def attention(xp_aug, hc, h, nheads):
        # score columns were folded into the augmented projection matmul
        s = xp_aug[:, hc + h:hc + h + 1]                       # (N, 1) src score
        d = xp_aug[:, hc + nheads + h:hc + nheads + h + 1]     # (N, 1) dst score
        e = d + s.T                                    # e[i, j] = dst_i + src_j
        e = jnp.where(e > 0, e, f32(0.2) * e)          # LeakyReLU(0.2)
        e = e + adj_bias                               # non-edges -> ~-1e30
        e = e - jnp.max(e, axis=-1, keepdims=True)     # stable softmax over j
        p = jnp.exp(e)
        inv = pl.reciprocal(jnp.sum(p, axis=-1, keepdims=True), approx=True)
        return (p * inv).astype(bf16)                  # (N, N)

    # ---------------- x path ----------------
    x0 = input_linear(mask_feat_ref[...])              # (N, HID) f32

    # GATConv 1 (heads=H, C=c1): one augmented matmul -> [xp | s_h.. | d_h..]
    xp1 = jnp.dot(x0.astype(bf16), g1_w_ref[...], preferred_element_type=f32)
    hc1 = heads * c1
    for h in range(heads):                             # few heads -> unrolled
        attn = attention(xp1, hc1, h, heads)
        vh = xp1[:, h * c1:(h + 1) * c1].astype(bf16)
        # write each head directly into its output slice (no concat relayout)
        x1_scr[:, h * c1:(h + 1) * c1] = jnp.dot(
            attn, vh, preferred_element_type=f32)
    x1 = x1_scr[...] + g1_b_ref[...]                   # (N, HID)
    # TODO(synk): F.dropout skipped -> identity (eval/inference mode).

    # GATConv 2 (heads=1, C=hidden)
    xp2 = jnp.dot(x1.astype(bf16), g2_w_ref[...], preferred_element_type=f32)
    attn2 = attention(xp2, hidden, 0, 1)
    x2 = jnp.dot(attn2, xp2[:, :hidden].astype(bf16),
                 preferred_element_type=f32) + g2_b_ref[...]

    # output linear (lane-padded; zero columns beyond out_dim)
    x_out = jnp.dot(x2.astype(bf16), w_out, preferred_element_type=f32) + b_out

    # ---------------- mask path ----------------
    m0 = input_linear(diff_ref[...])                   # (N, HID)
    m_out = jnp.dot(m0.astype(bf16), w_out, preferred_element_type=f32) + b_out

    # torch also computes an unused `aplha` tensor (dead code) -- skipped.
    o_ref[...] = x_out * m_out                         # lane-dense (N, 128) store


# ----------------------------- wrapper helpers (plain JAX) -------------------
def _augment_gat_weight(w, a_src, a_dst, heads, c):
    """Append per-head columns W_h @ a_src_h and W_h @ a_dst_h to W."""
    s_cols, d_cols = [], []
    for h in range(heads):
        wh = w[:, h * c:(h + 1) * c]                   # (F_in, C)
        s_cols.append(wh @ a_src[h])                   # (F_in,)
        d_cols.append(wh @ a_dst[h])
    return jnp.concatenate(
        [w, jnp.stack(s_cols, axis=1), jnp.stack(d_cols, axis=1)], axis=1)


def build_adj_bias(edge_index, n):
    """Dense additive mask: 0 where edge j->i (incl. self-loops), -1e30 else."""
    src, dst = edge_index[0], edge_index[1]
    adj = jnp.zeros((n, n), jnp.float32).at[dst, src].set(1.0)
    idx = jnp.arange(n)
    adj = adj.at[idx, idx].set(1.0)                    # add_self_loops=True
    return jnp.where(adj > 0, 0.0, _NEG_INF).astype(jnp.float32)


def init_params(key, emb, hidden, out_dim, heads):
    c1 = hidden // heads
    ks = jax.random.split(key, 10)

    def glorot(k, fan_in, fan_out, shape):
        lim = (6.0 / (fan_in + fan_out)) ** 0.5
        return jax.random.uniform(k, shape, jnp.float32, -lim, lim)

    return dict(
        w_in=glorot(ks[0], emb, hidden, (emb, hidden)),
        b_in=glorot(ks[1], hidden, 1, (1, hidden)) * 0.1,
        g1_w=glorot(ks[2], hidden, heads * c1, (hidden, heads * c1)),
        g1_as=glorot(ks[3], c1, 1, (heads, c1)),
        g1_ad=glorot(ks[4], c1, 1, (heads, c1)),
        g1_b=jnp.zeros((1, heads * c1), jnp.float32),
        g2_w=glorot(ks[5], hidden, hidden, (hidden, hidden)),
        g2_as=glorot(ks[6], hidden, 1, (1, hidden)),
        g2_ad=glorot(ks[7], hidden, 1, (1, hidden)),
        g2_b=jnp.zeros((1, hidden), jnp.float32),
        w_out2=glorot(ks[8], hidden, out_dim, (hidden, out_dim)),
        b_out2=glorot(ks[9], out_dim, 1, (1, out_dim)) * 0.1,
    )


@functools.partial(jax.jit, static_argnames=("hidden", "heads", "out_dim"))
def gat_forward(mask_feature, feature, edge_index, edge_type, params,
                hidden, heads, out_dim):
    del edge_type                                      # unused in torch forward
    n, emb = mask_feature.shape
    c1 = hidden // heads

    adj_bias = build_adj_bias(edge_index, n)

    # fold attention vectors into the projection matmuls; cast weights to bf16
    g1_w = _augment_gat_weight(params["g1_w"], params["g1_as"],
                               params["g1_ad"], heads, c1).astype(jnp.bfloat16)
    g2_w = _augment_gat_weight(params["g2_w"], params["g2_as"],
                               params["g2_ad"], 1, hidden).astype(jnp.bfloat16)

    # lane-pad the output projection to _OUT_PAD columns (zeros beyond out_dim)
    w_out = (jnp.zeros((hidden, _OUT_PAD), jnp.float32)
             .at[:, :out_dim].set(params["w_out2"]).astype(jnp.bfloat16))
    b_out = (jnp.zeros((1, _OUT_PAD), jnp.float32)
             .at[:, :out_dim].set(params["b_out2"]))

    mf = mask_feature.astype(jnp.bfloat16)
    diff = (feature.astype(jnp.float32)
            - mask_feature.astype(jnp.float32)).astype(jnp.bfloat16)

    args = (mf, diff, adj_bias,
            params["w_in"].astype(jnp.bfloat16), params["b_in"],
            g1_w, params["g1_b"], g2_w, params["g2_b"], w_out, b_out)

    flops = (2 * 2 * n * emb * hidden                    # two input linears
             + 2 * n * hidden * (hidden + 2 * heads)     # gat1 aug projection
             + heads * 2 * n * n * c1                    # gat1 aggregation
             + 2 * n * hidden * (hidden + 2)             # gat2 aug projection
             + 2 * n * n * hidden                        # gat2 aggregation
             + 2 * 2 * n * hidden * _OUT_PAD)            # two output linears
    transcendentals = (heads + 1) * n * (n + 1)          # exp + reciprocal
    bytes_accessed = (sum(int(a.size) * a.dtype.itemsize for a in args)
                      + n * _OUT_PAD * 4)

    out_padded = pl.pallas_call(
        functools.partial(_gat_fused_kernel, heads=heads, c1=c1, hidden=hidden),
        out_shape=jax.ShapeDtypeStruct((n, _OUT_PAD), jnp.float32),
        in_specs=[pl.BlockSpec(memory_space=VMEM)] * len(args),
        out_specs=pl.BlockSpec(memory_space=VMEM),
        scratch_shapes=[pltpu.VMEM((n, hidden), jnp.float32)],
        cost_estimate=pl.CostEstimate(flops=flops,
                                      transcendentals=transcendentals,
                                      bytes_accessed=bytes_accessed),
    )(*args)
    return out_padded[:, :out_dim]


if __name__ == "__main__":
    N, EMB, HID, OUT, HEADS = 8, 16, 32, 2, 4

    key = jax.random.PRNGKey(0)
    k_mask, k_feat, k_par = jax.random.split(key, 3)

    mask_feature = jax.random.normal(k_mask, (N, EMB), jnp.float32)
    feature = jax.random.normal(k_feat, (N, EMB), jnp.float32)

    # deterministic bidirectional ring graph, no duplicates / self-loops
    src = jnp.arange(N, dtype=jnp.int32)
    dst = (src + 1) % N
    edge_index = jnp.stack([jnp.concatenate([src, dst]),
                            jnp.concatenate([dst, src])])        # (2, 16)
    edge_type = jnp.zeros((edge_index.shape[1],), jnp.int32)     # unused

    params = init_params(k_par, EMB, HID, OUT, HEADS)

    out = gat_forward(mask_feature, feature, edge_index, edge_type,
                      params, hidden=HID, heads=HEADS, out_dim=OUT)
    out = jax.block_until_ready(out)
    assert out.shape == (N, OUT) and out.dtype == jnp.float32
    assert bool(jnp.all(jnp.isfinite(out)))
    print("KERNEL_OK")
</pallas_src>

<mosaic_0001>
module attributes {stable_mosaic.version = 11 : i64} {
  func.func @_gat_fused_kernel(%arg0: memref<8x16xbf16, #tpu.memory_space<vmem>>, %arg1: memref<8x16xbf16, #tpu.memory_space<vmem>>, %arg2: memref<8x8xf32, #tpu.memory_space<vmem>>, %arg3: memref<16x32xbf16, #tpu.memory_space<vmem>>, %arg4: memref<1x32xf32, #tpu.memory_space<vmem>>, %arg5: memref<32x40xbf16, #tpu.memory_space<vmem>>, %arg6: memref<1x32xf32, #tpu.memory_space<vmem>>, %arg7: memref<32x34xbf16, #tpu.memory_space<vmem>>, %arg8: memref<1x32xf32, #tpu.memory_space<vmem>>, %arg9: memref<32x128xbf16, #tpu.memory_space<vmem>>, %arg10: memref<1x128xf32, #tpu.memory_space<vmem>>, %arg11: memref<8x128xf32, #tpu.memory_space<vmem>>, %arg12: memref<8x32xf32, #tpu.memory_space<vmem>>) attributes {dimension_semantics = [], scalar_prefetch = 0 : i64, scratch_operands = 1 : i64, tpu.core_type = #tpu.core_type<tc>} {
    %c0 = arith.constant 0 : index
    %c0_0 = arith.constant 0 : index
    %0 = vector.load %arg2[%c0, %c0_0] : memref<8x8xf32, #tpu.memory_space<vmem>>, vector<8x8xf32>
    %c0_1 = arith.constant 0 : index
    %c0_2 = arith.constant 0 : index
    %1 = vector.load %arg3[%c0_1, %c0_2] : memref<16x32xbf16, #tpu.memory_space<vmem>>, vector<16x32xbf16>
    %c0_3 = arith.constant 0 : index
    %c0_4 = arith.constant 0 : index
    %2 = vector.load %arg4[%c0_3, %c0_4] : memref<1x32xf32, #tpu.memory_space<vmem>>, vector<1x32xf32>
    %c0_5 = arith.constant 0 : index
    %c0_6 = arith.constant 0 : index
    %3 = vector.load %arg9[%c0_5, %c0_6] : memref<32x128xbf16, #tpu.memory_space<vmem>>, vector<32x128xbf16>
    %c0_7 = arith.constant 0 : index
    %c0_8 = arith.constant 0 : index
    %4 = vector.load %arg10[%c0_7, %c0_8] : memref<1x128xf32, #tpu.memory_space<vmem>>, vector<1x128xf32>
    %c0_9 = arith.constant 0 : index
    %c0_10 = arith.constant 0 : index
    %5 = vector.load %arg0[%c0_9, %c0_10] : memref<8x16xbf16, #tpu.memory_space<vmem>>, vector<8x16xbf16>
    %cst = arith.constant dense<0.000000e+00> : vector<8x32xf32>
    %6 = tpu.matmul %5, %1, %cst {dimension_numbers = #tpu.dot_dimension_numbers<[1], [0], [0], [1], [0, 0, 1, 1], [], []>} : vector<8x16xbf16>, vector<16x32xbf16>, vector<8x32xf32> -> vector<8x32xf32>
    %7 = vector.broadcast %2 : vector<1x32xf32> to vector<8x32xf32>
    %8 = arith.addf %6, %7 : vector<8x32xf32>
    %cst_11 = arith.constant 0.000000e+00 : f32
    %9 = vector.broadcast %cst_11 : f32 to vector<8x32xf32>
    %10 = arith.cmpf ogt, %8, %9 : vector<8x32xf32>
    %cst_12 = arith.constant 0.00999999977 : f32
    %11 = vector.broadcast %cst_12 : f32 to vector<8x32xf32>
    %12 = arith.mulf %11, %8 : vector<8x32xf32>
    %13 = arith.select %10, %8, %12 : vector<8x32xi1>, vector<8x32xf32>
    %14 = arith.truncf %13 : vector<8x32xf32> to vector<8x32xbf16>
    %c0_13 = arith.constant 0 : index
    %c0_14 = arith.constant 0 : index
    %15 = vector.load %arg5[%c0_13, %c0_14] : memref<32x40xbf16, #tpu.memory_space<vmem>>, vector<32x40xbf16>
    %cst_15 = arith.constant dense<0.000000e+00> : vector<8x40xf32>
    %16 = tpu.matmul %14, %15, %cst_15 {dimension_numbers = #tpu.dot_dimension_numbers<[1], [0], [0], [1], [0, 0, 1, 1], [], []>} : vector<8x32xbf16>, vector<32x40xbf16>, vector<8x40xf32> -> vector<8x40xf32>
    %17 = vector.extract_strided_slice %16 {offsets = [0, 32], sizes = [8, 1], strides = [1, 1]} : vector<8x40xf32> to vector<8x1xf32>
    %18 = vector.extract_strided_slice %16 {offsets = [0, 36], sizes = [8, 1], strides = [1, 1]} : vector<8x40xf32> to vector<8x1xf32>
    %19 = tpu.transpose %17, [1, 0] : vector<8x1xf32> -> vector<1x8xf32>
    %20 = vector.broadcast %18 : vector<8x1xf32> to vector<8x8xf32>
    %21 = vector.broadcast %19 : vector<1x8xf32> to vector<8x8xf32>
    %22 = arith.addf %20, %21 : vector<8x8xf32>
    %cst_16 = arith.constant 0.000000e+00 : f32
    %23 = vector.broadcast %cst_16 : f32 to vector<8x8xf32>
    %24 = arith.cmpf ogt, %22, %23 : vector<8x8xf32>
    %cst_17 = arith.constant 2.000000e-01 : f32
    %25 = vector.broadcast %cst_17 : f32 to vector<8x8xf32>
    %26 = arith.mulf %25, %22 : vector<8x8xf32>
    %27 = arith.select %24, %22, %26 : vector<8x8xi1>, vector<8x8xf32>
    %28 = arith.addf %27, %0 : vector<8x8xf32>
    %cst_18 = arith.constant dense<0xFF800000> : vector<8xf32>
    %29 = vector.multi_reduction <maximumf>, %28, %cst_18 [1] : vector<8x8xf32> to vector<8xf32>
    %30 = vector.shape_cast %29 : vector<8xf32> to vector<8x1xf32>
    %31 = vector.broadcast %30 : vector<8x1xf32> to vector<8x8xf32>
    %32 = arith.subf %28, %31 : vector<8x8xf32>
    %33 = math.exp %32 : vector<8x8xf32>
    %cst_19 = arith.constant dense<0.000000e+00> : vector<8xf32>
    %34 = vector.multi_reduction <add>, %33, %cst_19 [1] : vector<8x8xf32> to vector<8xf32>
    %35 = vector.shape_cast %34 : vector<8xf32> to vector<8x1xf32>
    %36 = tpu.reciprocal %35 {approx = true} : vector<8x1xf32> -> vector<8x1xf32>
    %37 = vector.broadcast %36 : vector<8x1xf32> to vector<8x8xf32>
    %38 = arith.mulf %33, %37 : vector<8x8xf32>
    %39 = arith.truncf %38 : vector<8x8xf32> to vector<8x8xbf16>
    %40 = vector.extract_strided_slice %16 {offsets = [0, 0], sizes = [8, 8], strides = [1, 1]} : vector<8x40xf32> to vector<8x8xf32>
    %41 = arith.truncf %40 : vector<8x8xf32> to vector<8x8xbf16>
    %cst_20 = arith.constant dense<0.000000e+00> : vector<8x8xf32>
    %42 = tpu.matmul %39, %41, %cst_20 {dimension_numbers = #tpu.dot_dimension_numbers<[1], [0], [0], [1], [0, 0, 1, 1], [], []>} : vector<8x8xbf16>, vector<8x8xbf16>, vector<8x8xf32> -> vector<8x8xf32>
    %c0_21 = arith.constant 0 : index
    %c0_22 = arith.constant 0 : index
    %43 = vector.load %arg12[%c0_21, %c0_22] : memref<8x32xf32, #tpu.memory_space<vmem>>, vector<8x8xf32>
    tpu.vector_store %arg12[%c0_21, %c0_22], %42 {strides = array<i32>} : memref<8x32xf32, #tpu.memory_space<vmem>>, vector<8x8xf32>,
    %44 = vector.extract_strided_slice %16 {offsets = [0, 33], sizes = [8, 1], strides = [1, 1]} : vector<8x40xf32> to vector<8x1xf32>
    %45 = vector.extract_strided_slice %16 {offsets = [0, 37], sizes = [8, 1], strides = [1, 1]} : vector<8x40xf32> to vector<8x1xf32>
    %46 = tpu.transpose %44, [1, 0] : vector<8x1xf32> -> vector<1x8xf32>
    %47 = vector.broadcast %45 : vector<8x1xf32> to vector<8x8xf32>
    %48 = vector.broadcast %46 : vector<1x8xf32> to vector<8x8xf32>
    %49 = arith.addf %47, %48 : vector<8x8xf32>
    %cst_23 = arith.constant 0.000000e+00 : f32
    %50 = vector.broadcast %cst_23 : f32 to vector<8x8xf32>
    %51 = arith.cmpf ogt, %49, %50 : vector<8x8xf32>
    %cst_24 = arith.constant 2.000000e-01 : f32
    %52 = vector.broadcast %cst_24 : f32 to vector<8x8xf32>
    %53 = arith.mulf %52, %49 : vector<8x8xf32>
    %54 = arith.select %51, %49, %53 : vector<8x8xi1>, vector<8x8xf32>
    %55 = arith.addf %54, %0 : vector<8x8xf32>
    %cst_25 = arith.constant dense<0xFF800000> : vector<8xf32>
    %56 = vector.multi_reduction <maximumf>, %55, %cst_25 [1] : vector<8x8xf32> to vector<8xf32>
    %57 = vector.shape_cast %56 : vector<8xf32> to vector<8x1xf32>
    %58 = vector.broadcast %57 : vector<8x1xf32> to vector<8x8xf32>
    %59 = arith.subf %55, %58 : vector<8x8xf32>
    %60 = math.exp %59 : vector<8x8xf32>
    %cst_26 = arith.constant dense<0.000000e+00> : vector<8xf32>
    %61 = vector.multi_reduction <add>, %60, %cst_26 [1] : vector<8x8xf32> to vector<8xf32>
    %62 = vector.shape_cast %61 : vector<8xf32> to vector<8x1xf32>
    %63 = tpu.reciprocal %62 {approx = true} : vector<8x1xf32> -> vector<8x1xf32>
    %64 = vector.broadcast %63 : vector<8x1xf32> to vector<8x8xf32>
    %65 = arith.mulf %60, %64 : vector<8x8xf32>
    %66 = arith.truncf %65 : vector<8x8xf32> to vector<8x8xbf16>
    %67 = vector.extract_strided_slice %16 {offsets = [0, 8], sizes = [8, 8], strides = [1, 1]} : vector<8x40xf32> to vector<8x8xf32>
    %68 = arith.truncf %67 : vector<8x8xf32> to vector<8x8xbf16>
    %cst_27 = arith.constant dense<0.000000e+00> : vector<8x8xf32>
    %69 = tpu.matmul %66, %68, %cst_27 {dimension_numbers = #tpu.dot_dimension_numbers<[1], [0], [0], [1], [0, 0, 1, 1], [], []>} : vector<8x8xbf16>, vector<8x8xbf16>, vector<8x8xf32> -> vector<8x8xf32>
    %c0_28 = arith.constant 0 : index
    %c8 = arith.constant 8 : index
    %70 = vector.load %arg12[%c0_28, %c8] : memref<8x32xf32, #tpu.memory_space<vmem>>, vector<8x8xf32>
    tpu.vector_store %arg12[%c0_28, %c8], %69 {strides = array<i32>} : memref<8x32xf32, #tpu.memory_space<vmem>>, vector<8x8xf32>,
    %71 = vector.extract_strided_slice %16 {offsets = [0, 34], sizes = [8, 1], strides = [1, 1]} : vector<8x40xf32> to vector<8x1xf32>
    %72 = vector.extract_strided_slice %16 {offsets = [0, 38], sizes = [8, 1], strides = [1, 1]} : vector<8x40xf32> to vector<8x1xf32>
    %73 = tpu.transpose %71, [1, 0] : vector<8x1xf32> -> vector<1x8xf32>
    %74 = vector.broadcast %72 : vector<8x1xf32> to vector<8x8xf32>
    %75 = vector.broadcast %73 : vector<1x8xf32> to vector<8x8xf32>
    %76 = arith.addf %74, %75 : vector<8x8xf32>
    %cst_29 = arith.constant 0.000000e+00 : f32
    %77 = vector.broadcast %cst_29 : f32 to vector<8x8xf32>
    %78 = arith.cmpf ogt, %76, %77 : vector<8x8xf32>
    %cst_30 = arith.constant 2.000000e-01 : f32
    %79 = vector.broadcast %cst_30 : f32 to vector<8x8xf32>
    %80 = arith.mulf %79, %76 : vector<8x8xf32>
    %81 = arith.select %78, %76, %80 : vector<8x8xi1>, vector<8x8xf32>
    %82 = arith.addf %81, %0 : vector<8x8xf32>
    %cst_31 = arith.constant dense<0xFF800000> : vector<8xf32>
    %83 = vector.multi_reduction <maximumf>, %82, %cst_31 [1] : vector<8x8xf32> to vector<8xf32>
    %84 = vector.shape_cast %83 : vector<8xf32> to vector<8x1xf32>
    %85 = vector.broadcast %84 : vector<8x1xf32> to vector<8x8xf32>
    %86 = arith.subf %82, %85 : vector<8x8xf32>
    %87 = math.exp %86 : vector<8x8xf32>
    %cst_32 = arith.constant dense<0.000000e+00> : vector<8xf32>
    %88 = vector.multi_reduction <add>, %87, %cst_32 [1] : vector<8x8xf32> to vector<8xf32>
    %89 = vector.shape_cast %88 : vector<8xf32> to vector<8x1xf32>
    %90 = tpu.reciprocal %89 {approx = true} : vector<8x1xf32> -> vector<8x1xf32>
    %91 = vector.broadcast %90 : vector<8x1xf32> to vector<8x8xf32>
    %92 = arith.mulf %87, %91 : vector<8x8xf32>
    %93 = arith.truncf %92 : vector<8x8xf32> to vector<8x8xbf16>
    %94 = vector.extract_strided_slice %16 {offsets = [0, 16], sizes = [8, 8], strides = [1, 1]} : vector<8x40xf32> to vector<8x8xf32>
    %95 = arith.truncf %94 : vector<8x8xf32> to vector<8x8xbf16>
    %cst_33 = arith.constant dense<0.000000e+00> : vector<8x8xf32>
    %96 = tpu.matmul %93, %95, %cst_33 {dimension_numbers = #tpu.dot_dimension_numbers<[1], [0], [0], [1], [0, 0, 1, 1], [], []>} : vector<8x8xbf16>, vector<8x8xbf16>, vector<8x8xf32> -> vector<8x8xf32>
    %c0_34 = arith.constant 0 : index
    %c16 = arith.constant 16 : index
    %97 = vector.load %arg12[%c0_34, %c16] : memref<8x32xf32, #tpu.memory_space<vmem>>, vector<8x8xf32>
    tpu.vector_store %arg12[%c0_34, %c16], %96 {strides = array<i32>} : memref<8x32xf32, #tpu.memory_space<vmem>>, vector<8x8xf32>,
    %98 = vector.extract_strided_slice %16 {offsets = [0, 35], sizes = [8, 1], strides = [1, 1]} : vector<8x40xf32> to vector<8x1xf32>
    %99 = vector.extract_strided_slice %16 {offsets = [0, 39], sizes = [8, 1], strides = [1, 1]} : vector<8x40xf32> to vector<8x1xf32>
    %100 = tpu.transpose %98, [1, 0] : vector<8x1xf32> -> vector<1x8xf32>
    %101 = vector.broadcast %99 : vector<8x1xf32> to vector<8x8xf32>
    %102 = vector.broadcast %100 : vector<1x8xf32> to vector<8x8xf32>
    %103 = arith.addf %101, %102 : vector<8x8xf32>
    %cst_35 = arith.constant 0.000000e+00 : f32
    %104 = vector.broadcast %cst_35 : f32 to vector<8x8xf32>
    %105 = arith.cmpf ogt, %103, %104 : vector<8x8xf32>
    %cst_36 = arith.constant 2.000000e-01 : f32
    %106 = vector.broadcast %cst_36 : f32 to vector<8x8xf32>
    %107 = arith.mulf %106, %103 : vector<8x8xf32>
    %108 = arith.select %105, %103, %107 : vector<8x8xi1>, vector<8x8xf32>
    %109 = arith.addf %108, %0 : vector<8x8xf32>
    %cst_37 = arith.constant dense<0xFF800000> : vector<8xf32>
    %110 = vector.multi_reduction <maximumf>, %109, %cst_37 [1] : vector<8x8xf32> to vector<8xf32>
    %111 = vector.shape_cast %110 : vector<8xf32> to vector<8x1xf32>
    %112 = vector.broadcast %111 : vector<8x1xf32> to vector<8x8xf32>
    %113 = arith.subf %109, %112 : vector<8x8xf32>
    %114 = math.exp %113 : vector<8x8xf32>
    %cst_38 = arith.constant dense<0.000000e+00> : vector<8xf32>
    %115 = vector.multi_reduction <add>, %114, %cst_38 [1] : vector<8x8xf32> to vector<8xf32>
    %116 = vector.shape_cast %115 : vector<8xf32> to vector<8x1xf32>
    %117 = tpu.reciprocal %116 {approx = true} : vector<8x1xf32> -> vector<8x1xf32>
    %118 = vector.broadcast %117 : vector<8x1xf32> to vector<8x8xf32>
    %119 = arith.mulf %114, %118 : vector<8x8xf32>
    %120 = arith.truncf %119 : vector<8x8xf32> to vector<8x8xbf16>
    %121 = vector.extract_strided_slice %16 {offsets = [0, 24], sizes = [8, 8], strides = [1, 1]} : vector<8x40xf32> to vector<8x8xf32>
    %122 = arith.truncf %121 : vector<8x8xf32> to vector<8x8xbf16>
    %cst_39 = arith.constant dense<0.000000e+00> : vector<8x8xf32>
    %123 = tpu.matmul %120, %122, %cst_39 {dimension_numbers = #tpu.dot_dimension_numbers<[1], [0], [0], [1], [0, 0, 1, 1], [], []>} : vector<8x8xbf16>, vector<8x8xbf16>, vector<8x8xf32> -> vector<8x8xf32>
    %c0_40 = arith.constant 0 : index
    %c24 = arith.constant 24 : index
    %124 = vector.load %arg12[%c0_40, %c24] : memref<8x32xf32, #tpu.memory_space<vmem>>, vector<8x8xf32>
    tpu.vector_store %arg12[%c0_40, %c24], %123 {strides = array<i32>} : memref<8x32xf32, #tpu.memory_space<vmem>>, vector<8x8xf32>,
    %c0_41 = arith.constant 0 : index
    %c0_42 = arith.constant 0 : index
    %125 = vector.load %arg12[%c0_41, %c0_42] : memref<8x32xf32, #tpu.memory_space<vmem>>, vector<8x32xf32>
    %c0_43 = arith.constant 0 : index
    %c0_44 = arith.constant 0 : index
    %126 = vector.load %arg6[%c0_43, %c0_44] : memref<1x32xf32, #tpu.memory_space<vmem>>, vector<1x32xf32>
    %127 = vector.broadcast %126 : vector<1x32xf32> to vector<8x32xf32>
    %128 = arith.addf %125, %127 : vector<8x32xf32>
    %129 = arith.truncf %128 : vector<8x32xf32> to vector<8x32xbf16>
    %c0_45 = arith.constant 0 : index
    %c0_46 = arith.constant 0 : index
    %130 = vector.load %arg7[%c0_45, %c0_46] : memref<32x34xbf16, #tpu.memory_space<vmem>>, vector<32x34xbf16>
    %cst_47 = arith.constant dense<0.000000e+00> : vector<8x34xf32>
    %131 = tpu.matmul %129, %130, %cst_47 {dimension_numbers = #tpu.dot_dimension_numbers<[1], [0], [0], [1], [0, 0, 1, 1], [], []>} : vector<8x32xbf16>, vector<32x34xbf16>, vector<8x34xf32> -> vector<8x34xf32>
    %132 = vector.extract_strided_slice %131 {offsets = [0, 32], sizes = [8, 1], strides = [1, 1]} : vector<8x34xf32> to vector<8x1xf32>
    %133 = vector.extract_strided_slice %131 {offsets = [0, 33], sizes = [8, 1], strides = [1, 1]} : vector<8x34xf32> to vector<8x1xf32>
    %134 = tpu.transpose %132, [1, 0] : vector<8x1xf32> -> vector<1x8xf32>
    %135 = vector.broadcast %133 : vector<8x1xf32> to vector<8x8xf32>
    %136 = vector.broadcast %134 : vector<1x8xf32> to vector<8x8xf32>
    %137 = arith.addf %135, %136 : vector<8x8xf32>
    %cst_48 = arith.constant 0.000000e+00 : f32
    %138 = vector.broadcast %cst_48 : f32 to vector<8x8xf32>
    %139 = arith.cmpf ogt, %137, %138 : vector<8x8xf32>
    %cst_49 = arith.constant 2.000000e-01 : f32
    %140 = vector.broadcast %cst_49 : f32 to vector<8x8xf32>
    %141 = arith.mulf %140, %137 : vector<8x8xf32>
    %142 = arith.select %139, %137, %141 : vector<8x8xi1>, vector<8x8xf32>
    %143 = arith.addf %142, %0 : vector<8x8xf32>
    %cst_50 = arith.constant dense<0xFF800000> : vector<8xf32>
    %144 = vector.multi_reduction <maximumf>, %143, %cst_50 [1] : vector<8x8xf32> to vector<8xf32>
    %145 = vector.shape_cast %144 : vector<8xf32> to vector<8x1xf32>
    %146 = vector.broadcast %145 : vector<8x1xf32> to vector<8x8xf32>
    %147 = arith.subf %143, %146 : vector<8x8xf32>
    %148 = math.exp %147 : vector<8x8xf32>
    %cst_51 = arith.constant dense<0.000000e+00> : vector<8xf32>
    %149 = vector.multi_reduction <add>, %148, %cst_51 [1] : vector<8x8xf32> to vector<8xf32>
    %150 = vector.shape_cast %149 : vector<8xf32> to vector<8x1xf32>
    %151 = tpu.reciprocal %150 {approx = true} : vector<8x1xf32> -> vector<8x1xf32>
    %152 = vector.broadcast %151 : vector<8x1xf32> to vector<8x8xf32>
    %153 = arith.mulf %148, %152 : vector<8x8xf32>
    %154 = arith.truncf %153 : vector<8x8xf32> to vector<8x8xbf16>
    %155 = vector.extract_strided_slice %131 {offsets = [0, 0], sizes = [8, 32], strides = [1, 1]} : vector<8x34xf32> to vector<8x32xf32>
    %156 = arith.truncf %155 : vector<8x32xf32> to vector<8x32xbf16>
    %cst_52 = arith.constant dense<0.000000e+00> : vector<8x32xf32>
    %157 = tpu.matmul %154, %156, %cst_52 {dimension_numbers = #tpu.dot_dimension_numbers<[1], [0], [0], [1], [0, 0, 1, 1], [], []>} : vector<8x8xbf16>, vector<8x32xbf16>, vector<8x32xf32> -> vector<8x32xf32>
    %c0_53 = arith.constant 0 : index
    %c0_54 = arith.constant 0 : index
    %158 = vector.load %arg8[%c0_53, %c0_54] : memref<1x32xf32, #tpu.memory_space<vmem>>, vector<1x32xf32>
    %159 = vector.broadcast %158 : vector<1x32xf32> to vector<8x32xf32>
    %160 = arith.addf %157, %159 : vector<8x32xf32>
    %161 = arith.truncf %160 : vector<8x32xf32> to vector<8x32xbf16>
    %cst_55 = arith.constant dense<0.000000e+00> : vector<8x128xf32>
    %162 = tpu.matmul %161, %3, %cst_55 {dimension_numbers = #tpu.dot_dimension_numbers<[1], [0], [0], [1], [0, 0, 1, 1], [], []>} : vector<8x32xbf16>, vector<32x128xbf16>, vector<8x128xf32> -> vector<8x128xf32>
    %163 = vector.broadcast %4 : vector<1x128xf32> to vector<8x128xf32>
    %164 = arith.addf %162, %163 : vector<8x128xf32>
    %c0_56 = arith.constant 0 : index
    %c0_57 = arith.constant 0 : index
    %165 = vector.load %arg1[%c0_56, %c0_57] : memref<8x16xbf16, #tpu.memory_space<vmem>>, vector<8x16xbf16>
    %cst_58 = arith.constant dense<0.000000e+00> : vector<8x32xf32>
    %166 = tpu.matmul %165, %1, %cst_58 {dimension_numbers = #tpu.dot_dimension_numbers<[1], [0], [0], [1], [0, 0, 1, 1], [], []>} : vector<8x16xbf16>, vector<16x32xbf16>, vector<8x32xf32> -> vector<8x32xf32>
    %167 = vector.broadcast %2 : vector<1x32xf32> to vector<8x32xf32>
    %168 = arith.addf %166, %167 : vector<8x32xf32>
    %cst_59 = arith.constant 0.000000e+00 : f32
    %169 = vector.broadcast %cst_59 : f32 to vector<8x32xf32>
    %170 = arith.cmpf ogt, %168, %169 : vector<8x32xf32>
    %cst_60 = arith.constant 0.00999999977 : f32
    %171 = vector.broadcast %cst_60 : f32 to vector<8x32xf32>
    %172 = arith.mulf %171, %168 : vector<8x32xf32>
    %173 = arith.select %170, %168, %172 : vector<8x32xi1>, vector<8x32xf32>
    %174 = arith.truncf %173 : vector<8x32xf32> to vector<8x32xbf16>
    %cst_61 = arith.constant dense<0.000000e+00> : vector<8x128xf32>
    %175 = tpu.matmul %174, %3, %cst_61 {dimension_numbers = #tpu.dot_dimension_numbers<[1], [0], [0], [1], [0, 0, 1, 1], [], []>} : vector<8x32xbf16>, vector<32x128xbf16>, vector<8x128xf32> -> vector<8x128xf32>
    %176 = vector.broadcast %4 : vector<1x128xf32> to vector<8x128xf32>
    %177 = arith.addf %175, %176 : vector<8x128xf32>
    %178 = arith.mulf %164, %177 : vector<8x128xf32>
    %c0_62 = arith.constant 0 : index
    %c0_63 = arith.constant 0 : index
    %179 = vector.load %arg11[%c0_62, %c0_63] : memref<8x128xf32, #tpu.memory_space<vmem>>, vector<8x128xf32>
    tpu.vector_store %arg11[%c0_62, %c0_63], %178 {strides = array<i32>} : memref<8x128xf32, #tpu.memory_space<vmem>>, vector<8x128xf32>,
    return
  }
}

</mosaic_0001>

<llo_original>
// kernel: gat_forward.1
$region0: #{gat_forward.1}
  #allocation0 [shape = 'u32[]', space=smem, size = 0x4, offset = 0x4, fixed_abs, tag = 'smem constant byte address 0x4 - core index']
  #allocation1 [shape = 'u32[144,128]{1,0:T(1,128)}', space=vmem, size = 0x12000, scoped, tag = 'internal scratch']
  #allocation2 [shape = 'f32[8,32]{1,0:T(8,128)}', space=vmem, size = 0x1000, scoped, tag = 'scratch operand']
  %s0 = inlined_call_operand.vmem [shape: bf16[8,16], index: 0, kind: input, shape index: {}]
  %s1 = inlined_call_operand.vmem [shape: bf16[8,16], index: 1, kind: input, shape index: {}]
  %s2 = inlined_call_operand.vmem [shape: f32[8,8], index: 2, kind: input, shape index: {}]
  %s3 = inlined_call_operand.vmem [shape: bf16[16,32], index: 3, kind: input, shape index: {}]
  %s4 = inlined_call_operand.vmem [shape: f32[1,32], index: 4, kind: input, shape index: {}]
  %s5 = inlined_call_operand.vmem [shape: bf16[32,40], index: 5, kind: input, shape index: {}]
  %s6 = inlined_call_operand.vmem [shape: f32[1,32], index: 6, kind: input, shape index: {}]
  %s7 = inlined_call_operand.vmem [shape: bf16[32,34], index: 7, kind: input, shape index: {}]
  %s8 = inlined_call_operand.vmem [shape: f32[1,32], index: 8, kind: input, shape index: {}]
  %s9 = inlined_call_operand.vmem [shape: bf16[32,128], index: 9, kind: input, shape index: {}]
  %s10 = inlined_call_operand.vmem [shape: f32[1,128], index: 10, kind: input, shape index: {}]
  %s11 = inlined_call_operand.vmem [shape: f32[8,128], index: 11, kind: output, shape index: {}]
  %s12 = sld [smem:[#allocation0]]
  $region54: #{gat_forward.1} parent=0
    _
  %s14 = ssub.s32 1, %s12
  %s15 = scalar_select 0, %s14, %s12
  // Predicated region
  $region2: #{gat_forward.1} parent=0 // pred_check
    _
  $region3: #{gat_forward.1} parent=0 // pred_check_branch
    %17 = sbr.rel (0) target = $region5
  $region4: #{gat_forward.1} parent=0 // pred_region
    _
  $region5: #{gat_forward.1} parent=0 // pred_fallthru
    _
  // Predicated region
  $region6: #{gat_forward.1} parent=0 // pred_check
    _
  $region7: #{gat_forward.1} parent=0 // pred_check_branch
    %19 = sbr.rel (0) target = $region9
  $region8: #{gat_forward.1} parent=0 // pred_region
    _
  $region9: #{gat_forward.1} parent=0 // pred_fallthru
    _
  // Predicated region
  $region10: #{gat_forward.1} parent=0 // pred_check
    _
  $region11: #{gat_forward.1} parent=0 // pred_check_branch
    %21 = sbr.rel (0) target = $region13
  $region12: #{gat_forward.1} parent=0 // pred_region
    _
  $region13: #{gat_forward.1} parent=0 // pred_fallthru
    _
  // Predicated region
  $region14: #{gat_forward.1} parent=0 // pred_check
    _
  $region15: #{gat_forward.1} parent=0 // pred_check_branch
    %23 = sbr.rel (0) target = $region17
  $region16: #{gat_forward.1} parent=0 // pred_region
    _
  $region17: #{gat_forward.1} parent=0 // pred_fallthru
    _
  // Predicated region
  $region18: #{gat_forward.1} parent=0 // pred_check
    _
  $region19: #{gat_forward.1} parent=0 // pred_check_branch
    %25 = sbr.rel (0) target = $region21
  $region20: #{gat_forward.1} parent=0 // pred_region
    _
  $region21: #{gat_forward.1} parent=0 // pred_fallthru
    _
  // Predicated region
  $region22: #{gat_forward.1} parent=0 // pred_check
    _
  $region23: #{gat_forward.1} parent=0 // pred_check_branch
    %27 = sbr.rel (0) target = $region25
  $region24: #{gat_forward.1} parent=0 // pred_region
    _
  $region25: #{gat_forward.1} parent=0 // pred_fallthru
    _
  // Predicated region
  $region26: #{gat_forward.1} parent=0 // pred_check
    _
  $region27: #{gat_forward.1} parent=0 // pred_check_branch
    %29 = sbr.rel (0) target = $region29
  $region28: #{gat_forward.1} parent=0 // pred_region
    _
  $region29: #{gat_forward.1} parent=0 // pred_fallthru
    _
  // Predicated region
  $region30: #{gat_forward.1} parent=0 // pred_check
    _
  $region31: #{gat_forward.1} parent=0 // pred_check_branch
    %31 = sbr.rel (0) target = $region33
  $region32: #{gat_forward.1} parent=0 // pred_region
    _
  $region33: #{gat_forward.1} parent=0 // pred_fallthru
    _
  // Predicated region
  $region34: #{gat_forward.1} parent=0 // pred_check
    _
  $region35: #{gat_forward.1} parent=0 // pred_check_branch
    %33 = sbr.rel (0) target = $region37
  $region36: #{gat_forward.1} parent=0 // pred_region
    _
  $region37: #{gat_forward.1} parent=0 // pred_fallthru
    _
  // Predicated region
  $region38: #{gat_forward.1} parent=0 // pred_check
    _
  $region39: #{gat_forward.1} parent=0 // pred_check_branch
    %35 = sbr.rel (0) target = $region41
  $region40: #{gat_forward.1} parent=0 // pred_region
    _
  $region41: #{gat_forward.1} parent=0 // pred_fallthru
    _
  // Predicated region
  $region42: #{gat_forward.1} parent=0 // pred_check
    _
  $region43: #{gat_forward.1} parent=0 // pred_check_branch
    %37 = sbr.rel (0) target = $region45
  $region44: #{gat_forward.1} parent=0 // pred_region
    _
  $region45: #{gat_forward.1} parent=0 // pred_fallthru
    _
  %v39 = vld [vmem:[%s2] sm:$0xff]
  %v40 = vld [vmem:[%s3] sm:$0xf]
  %v41 = vld [vmem:[%s3 + $0x4] sm:$0xf]
  %v42 = vld [vmem:[%s4] sm:$0x1]
  %v43 = vld [vmem:[%s9] sm:$0xf]
  %v44 = vld [vmem:[%s9 + $0x4] sm:$0xf]
  %v45 = vld [vmem:[%s9 + $0x8] sm:$0xf]
  %v46 = vld [vmem:[%s9 + $0xc] sm:$0xf]
  %v47 = vld [vmem:[%s10] sm:$0x1]
  %v48 = vld [vmem:[%s0] sm:$0xf]
  %v50 = vlaneseq
  %v51 = vshrl.u32 %v50, 7
  %v52 = vsub.s32 0, %v51
  %v53 = vrot.slane %v42, %v52
  %v57 = vunpack.c.l.b16 %v40
  %v58 = vunpack.c.l.b16 %v41
  %v59 = vpack.c.b16 %v58, %v57
  %vm61 = vcmask 130048
  %v63 = vsel %vm61, %v48, 0
  %65 = vmatprep.subr.bf16.mxu0 0
  %66 = vmatpush1.bf16.msra.mxu0 0
  %67 = vmatprep.subr.bf16.mxu0 0
  %68 = vmatpush1.bf16.msra.mxu0 0
  %69 = vmatprep.subr.bf16.mxu0 0
  %70 = vmatpush1.bf16.msra.mxu0 0
  %71 = vmatprep.subr.bf16.mxu0 0
  %72 = vmatpush1.bf16.msra.mxu0 0
  %73 = vmatprep.subr.bf16.mxu0 0
  %74 = vmatpush1.bf16.msra.mxu0 0
  %75 = vmatprep.subr.bf16.mxu0 0
  %76 = vmatpush1.bf16.msra.mxu0 0
  %77 = vmatprep.subr.bf16.mxu0 0
  %78 = vmatpush1.bf16.msra.mxu0 0
  %79 = vmatprep.subr.bf16.mxu0 0
  %80 = vmatpush1.bf16.msra.mxu0 %v59
  %81 = vmatprep.subr.bf16.mxu0 0
  %82 = vmatpush2.bf16.msra.mxu0 0
  %83 = vmatprep.subr.bf16.mxu0 0
  %84 = vmatpush2.bf16.msra.mxu0 0
  %85 = vmatprep.subr.bf16.mxu0 0
  %86 = vmatpush2.bf16.msra.mxu0 0
  %87 = vmatprep.subr.bf16.mxu0 0
  %88 = vmatpush2.bf16.msra.mxu0 0
  %89 = vmatprep.subr.bf16.mxu0 0
  %90 = vmatpush2.bf16.msra.mxu0 0
  %91 = vmatprep.subr.bf16.mxu0 0
  %92 = vmatpush2.bf16.msra.mxu0 0
  %93 = vmatprep.subr.bf16.mxu0 0
  %94 = vmatpush2.bf16.msra.mxu0 0
  %95 = vmatprep.subr.bf16.mxu0 0
  %96 = vmatpush2.bf16.msra.mxu0 0
  %97 = vmatprep.mubr.bf16.mxu0 0
  %98 = vmatmul.mubr.bf16.gmra.mxu0 %v63
  %v99 = vpop.f32.mrf.mxu0
  %v100 = vadd.f32 %v53, %v99
  %v101 = vpop.f32.mrf.mxu0
  %v102 = vpop.f32.mrf.mxu0
  %v103 = vpop.f32.mrf.mxu0
  %104 = vdwg.mxu0
  %vm105 = vcmp.gt.f32.partialorder %v100, 0.0
  %v106 = vmul.f32 %v100, 0.01
  %v107 = vsel %vm105, %v100, %v106
  %v108 = vpack.c.bf16 %v107, %v107
  %v109 = vld [vmem:[%s5] sm:$0xf]
  %v110 = vld [vmem:[%s5 + $0x4] sm:$0xf]
  %v111 = vld [vmem:[%s5 + $0x8] sm:$0xf]
  %v112 = vld [vmem:[%s5 + $0xc] sm:$0xf]
  %v117 = vunpack.c.l.b16 %v109
  %v118 = vunpack.c.l.b16 %v110
  %v119 = vunpack.c.l.b16 %v111
  %v120 = vunpack.c.l.b16 %v112
  %v121 = vpack.c.b16 %v118, %v117
  %v122 = vpack.c.b16 %v120, %v119
  %vm125 = vcmask 261120
  %v127 = vsel %vm125, %v108, 0
  %129 = vmatprep.subr.bf16.mxu0 0
  %130 = vmatpush1.bf16.msra.mxu0 0
  %131 = vmatprep.subr.bf16.mxu0 0
  %132 = vmatpush1.bf16.msra.mxu0 0
  %133 = vmatprep.subr.bf16.mxu0 0
  %134 = vmatpush1.bf16.msra.mxu0 0
  %135 = vmatprep.subr.bf16.mxu0 0
  %136 = vmatpush1.bf16.msra.mxu0 0
  %137 = vmatprep.subr.bf16.mxu0 0
  %138 = vmatpush1.bf16.msra.mxu0 0
  %139 = vmatprep.subr.bf16.mxu0 0
  %140 = vmatpush1.bf16.msra.mxu0 0
  %141 = vmatprep.subr.bf16.mxu0 0
  %142 = vmatpush1.bf16.msra.mxu0 %v122
  %143 = vmatprep.subr.bf16.mxu0 0
  %144 = vmatpush1.bf16.msra.mxu0 %v121
  %145 = vmatprep.subr.bf16.mxu0 0
  %146 = vmatpush2.bf16.msra.mxu0 0
  %147 = vmatprep.subr.bf16.mxu0 0
  %148 = vmatpush2.bf16.msra.mxu0 0
  %149 = vmatprep.subr.bf16.mxu0 0
  %150 = vmatpush2.bf16.msra.mxu0 0
  %151 = vmatprep.subr.bf16.mxu0 0
  %152 = vmatpush2.bf16.msra.mxu0 0
  %153 = vmatprep.subr.bf16.mxu0 0
  %154 = vmatpush2.bf16.msra.mxu0 0
  %155 = vmatprep.subr.bf16.mxu0 0
  %156 = vmatpush2.bf16.msra.mxu0 0
  %157 = vmatprep.subr.bf16.mxu0 0
  %158 = vmatpush2.bf16.msra.mxu0 0
  %159 = vmatprep.subr.bf16.mxu0 0
  %160 = vmatpush2.bf16.msra.mxu0 0
  %161 = vmatprep.mubr.bf16.mxu0 0
  %162 = vmatmul.mubr.bf16.gmra.mxu0 %v127
  %v163 = vpop.f32.mrf.mxu0
  %v164 = vadd.f32 0.0, %v163
  %v165 = vpop.f32.mrf.mxu0
  %v166 = vpop.f32.mrf.mxu0
  %v167 = vpop.f32.mrf.mxu0
  %168 = vdwg.mxu0
  %170 = vrot.lane.b32.xlu0 %v164, 96
  %v171 = vpop.permute.xlu0 %170
  %173 = vxpose.xlu0.b32.start [1/16] %v171, 128
  %174 = vxpose.xlu0.b32.cont [2/16] 0.0, 128
  %175 = vxpose.xlu0.b32.cont [3/16] 0.0, 128
  %176 = vxpose.xlu0.b32.cont [4/16] 0.0, 128
  %177 = vxpose.xlu0.b32.cont [5/16] 0.0, 128
  %178 = vxpose.xlu0.b32.cont [6/16] 0.0, 128
  %179 = vxpose.xlu0.b32.cont [7/16] 0.0, 128
  %180 = vxpose.xlu0.b32.cont [8/16] 0.0, 128
  %181 = vxpose.xlu0.b32.cont [9/16] 0.0, 128
  %182 = vxpose.xlu0.b32.cont [10/16] 0.0, 128
  %183 = vxpose.xlu0.b32.cont [11/16] 0.0, 128
  %184 = vxpose.xlu0.b32.cont [12/16] 0.0, 128
  %185 = vxpose.xlu0.b32.cont [13/16] 0.0, 128
  %186 = vxpose.xlu0.b32.cont [14/16] 0.0, 128
  %187 = vxpose.xlu0.b32.cont [15/16] 0.0, 128
  %188 = vxpose.xlu0.b32.end [16/16] 0.0, 128
  %v189 = vpop.trf.xlu0
  %v190 = vpop.trf.xlu0
  %v191 = vpop.trf.xlu0
  %v192 = vpop.trf.xlu0
  %v193 = vpop.trf.xlu0
  %v194 = vpop.trf.xlu0
  %v195 = vpop.trf.xlu0
  %v196 = vpop.trf.xlu0
  %v197 = vpop.trf.xlu0
  %v198 = vpop.trf.xlu0
  %v199 = vpop.trf.xlu0
  %v200 = vpop.trf.xlu0
  %v201 = vpop.trf.xlu0
  %v202 = vpop.trf.xlu0
  %v203 = vpop.trf.xlu0
  %v204 = vpop.trf.xlu0
  %205 = vset.pattern.permute.xlu0 36
  %206 = vperm.xlu0 %205, %v164
  %v207 = vpop.permute.xlu0 %206
  %v209 = vlaneseq
  %v210 = vshrl.u32 %v209, 7
  %v211 = vsub.s32 0, %v210
  %v212 = vrot.slane %v189, %v211
  %v213 = vadd.f32 %v207, %v212
  %vm214 = vcmp.gt.f32.partialorder %v213, 0.0
  %v215 = vmul.f32 %v213, 0.2
  %v216 = vsel %vm214, %v213, %v215
  %v217 = vadd.f32 %v216, %v39
  %vm218 = vcmask 64512
  %v219 = vsel %vm218, %v217, -inf
  %220 = vmax.xlane.f32.xlu0 %v219
  %v221 = vpop.xlane.xlu0 %220
  %v222 = vsub.f32 %v217, %v221
  %v223 = vmul.f32 %v222, 1.442695
  %v224 = vpow.pop %v223
  %v225 = vsel %vm218, %v224, 0.0
  %226 = vadd.xlane.f32.xlu0 %v225
  %v227 = vpop.xlane.xlu0 %226
  %v228 = vrcp.pop %v227
  %v229 = vmul.f32 %v224, %v228
  %v230 = vpack.c.bf16 %v229, %v229
  %v231 = vpack.c.bf16 %v164, %v164
  %v233 = vsel %vm218, %v230, 0
  %vm235 = vcmask 1043456
  %v237 = vsel %vm235, %v231, 0
  %239 = vmatprep.subr.bf16.mxu0 0
  %240 = vmatpush1.bf16.msra.mxu0 0
  %241 = vmatprep.subr.bf16.mxu0 0
  %242 = vmatpush1.bf16.msra.mxu0 0
  %243 = vmatprep.subr.bf16.mxu0 0
  %244 = vmatpush1.bf16.msra.mxu0 0
  %245 = vmatprep.subr.bf16.mxu0 0
  %246 = vmatpush1.bf16.msra.mxu0 0
  %247 = vmatprep.subr.bf16.mxu0 0
  %248 = vmatpush1.bf16.msra.mxu0 0
  %249 = vmatprep.subr.bf16.mxu0 0
  %250 = vmatpush1.bf16.msra.mxu0 0
  %251 = vmatprep.subr.bf16.mxu0 0
  %252 = vmatpush1.bf16.msra.mxu0 0
  %253 = vmatprep.subr.bf16.mxu0 0
  %254 = vmatpush1.bf16.msra.mxu0 %v237
  %255 = vmatprep.subr.bf16.mxu0 0
  %256 = vmatpush2.bf16.msra.mxu0 0
  %257 = vmatprep.subr.bf16.mxu0 0
  %258 = vmatpush2.bf16.msra.mxu0 0
  %259 = vmatprep.subr.bf16.mxu0 0
  %260 = vmatpush2.bf16.msra.mxu0 0
  %261 = vmatprep.subr.bf16.mxu0 0
  %262 = vmatpush2.bf16.msra.mxu0 0
  %263 = vmatprep.subr.bf16.mxu0 0
  %264 = vmatpush2.bf16.msra.mxu0 0
  %265 = vmatprep.subr.bf16.mxu0 0
  %266 = vmatpush2.bf16.msra.mxu0 0
  %267 = vmatprep.subr.bf16.mxu0 0
  %268 = vmatpush2.bf16.msra.mxu0 0
  %269 = vmatprep.subr.bf16.mxu0 0
  %270 = vmatpush2.bf16.msra.mxu0 0
  %271 = vmatprep.mubr.bf16.mxu0 0
  %272 = vmatmul.mubr.bf16.gmra.mxu0 %v233
  %v273 = vpop.f32.mrf.mxu0
  %v274 = vadd.f32 0.0, %v273
  %v275 = vpop.f32.mrf.mxu0
  %v276 = vpop.f32.mrf.mxu0
  %v277 = vpop.f32.mrf.mxu0
  %278 = vdwg.mxu0
  %279 = vst.msk [vmem:[#allocation2] sm:$0xff] %vm218, %v274
  %280 = vrot.lane.b32.xlu0 %v164, 95
  %v281 = vpop.permute.xlu0 %280
  %283 = vxpose.xlu0.b32.start [1/16] %v281, 128
  %284 = vxpose.xlu0.b32.cont [2/16] 0.0, 128
  %285 = vxpose.xlu0.b32.cont [3/16] 0.0, 128
  %286 = vxpose.xlu0.b32.cont [4/16] 0.0, 128
  %287 = vxpose.xlu0.b32.cont [5/16] 0.0, 128
  %288 = vxpose.xlu0.b32.cont [6/16] 0.0, 128
  %289 = vxpose.xlu0.b32.cont [7/16] 0.0, 128
  %290 = vxpose.xlu0.b32.cont [8/16] 0.0, 128
  %291 = vxpose.xlu0.b32.cont [9/16] 0.0, 128
  %292 = vxpose.xlu0.b32.cont [10/16] 0.0, 128
  %293 = vxpose.xlu0.b32.cont [11/16] 0.0, 128
  %294 = vxpose.xlu0.b32.cont [12/16] 0.0, 128
  %295 = vxpose.xlu0.b32.cont [13/16] 0.0, 128
  %296 = vxpose.xlu0.b32.cont [14/16] 0.0, 128
  %297 = vxpose.xlu0.b32.cont [15/16] 0.0, 128
  %298 = vxpose.xlu0.b32.end [16/16] 0.0, 128
  %v299 = vpop.trf.xlu0
  %v300 = vpop.trf.xlu0
  %v301 = vpop.trf.xlu0
  %v302 = vpop.trf.xlu0
  %v303 = vpop.trf.xlu0
  %v304 = vpop.trf.xlu0
  %v305 = vpop.trf.xlu0
  %v306 = vpop.trf.xlu0
  %v307 = vpop.trf.xlu0
  %v308 = vpop.trf.xlu0
  %v309 = vpop.trf.xlu0
  %v310 = vpop.trf.xlu0
  %v311 = vpop.trf.xlu0
  %v312 = vpop.trf.xlu0
  %v313 = vpop.trf.xlu0
  %v314 = vpop.trf.xlu0
  %315 = vset.pattern.permute.xlu0 37
  %316 = vperm.xlu0 %315, %v164
  %v317 = vpop.permute.xlu0 %316
  %v319 = vlaneseq
  %v320 = vshrl.u32 %v319, 7
  %v321 = vsub.s32 0, %v320
  %v322 = vrot.slane %v299, %v321
  %v323 = vadd.f32 %v317, %v322
  %vm324 = vcmp.gt.f32.partialorder %v323, 0.0
  %v325 = vmul.f32 %v323, 0.2
  %v326 = vsel %vm324, %v323, %v325
  %v327 = vadd.f32 %v326, %v39
  %v328 = vsel %vm218, %v327, -inf
  %329 = vmax.xlane.f32.xlu0 %v328
  %v330 = vpop.xlane.xlu0 %329
  %v331 = vsub.f32 %v327, %v330
  %v332 = vmul.f32 %v331, 1.442695
  %v333 = vpow.pop %v332
  %v334 = vsel %vm218, %v333, 0.0
  %335 = vadd.xlane.f32.xlu0 %v334
  %v336 = vpop.xlane.xlu0 %335
  %v337 = vrcp.pop %v336
  %v338 = vmul.f32 %v333, %v337
  %v339 = vpack.c.bf16 %v338, %v338
  %341 = vrot.lane.b32.xlu0 %v231, 120
  %v342 = vpop.permute.xlu0 %341
  %v344 = vsel %vm218, %v339, 0
  %v347 = vsel %vm235, %v342, 0
  %349 = vmatprep.subr.bf16.mxu0 0
  %350 = vmatpush1.bf16.msra.mxu0 0
  %351 = vmatprep.subr.bf16.mxu0 0
  %352 = vmatpush1.bf16.msra.mxu0 0
  %353 = vmatprep.subr.bf16.mxu0 0
  %354 = vmatpush1.bf16.msra.mxu0 0
  %355 = vmatprep.subr.bf16.mxu0 0
  %356 = vmatpush1.bf16.msra.mxu0 0
  %357 = vmatprep.subr.bf16.mxu0 0
  %358 = vmatpush1.bf16.msra.mxu0 0
  %359 = vmatprep.subr.bf16.mxu0 0
  %360 = vmatpush1.bf16.msra.mxu0 0
  %361 = vmatprep.subr.bf16.mxu0 0
  %362 = vmatpush1.bf16.msra.mxu0 0
  %363 = vmatprep.subr.bf16.mxu0 0
  %364 = vmatpush1.bf16.msra.mxu0 %v347
  %365 = vmatprep.subr.bf16.mxu0 0
  %366 = vmatpush2.bf16.msra.mxu0 0
  %367 = vmatprep.subr.bf16.mxu0 0
  %368 = vmatpush2.bf16.msra.mxu0 0
  %369 = vmatprep.subr.bf16.mxu0 0
  %370 = vmatpush2.bf16.msra.mxu0 0
  %371 = vmatprep.subr.bf16.mxu0 0
  %372 = vmatpush2.bf16.msra.mxu0 0
  %373 = vmatprep.subr.bf16.mxu0 0
  %374 = vmatpush2.bf16.msra.mxu0 0
  %375 = vmatprep.subr.bf16.mxu0 0
  %376 = vmatpush2.bf16.msra.mxu0 0
  %377 = vmatprep.subr.bf16.mxu0 0
  %378 = vmatpush2.bf16.msra.mxu0 0
  %379 = vmatprep.subr.bf16.mxu0 0
  %380 = vmatpush2.bf16.msra.mxu0 0
  %381 = vmatprep.mubr.bf16.mxu0 0
  %382 = vmatmul.mubr.bf16.gmra.mxu0 %v344
  %v383 = vpop.f32.mrf.mxu0
  %v384 = vadd.f32 0.0, %v383
  %v385 = vpop.f32.mrf.mxu0
  %v386 = vpop.f32.mrf.mxu0
  %v387 = vpop.f32.mrf.mxu0
  %388 = vdwg.mxu0
  %390 = vrot.lane.b32.xlu0 %v384, 8
  %v391 = vpop.permute.xlu0 %390
  %vm393 = vcmask 130112
  %394 = vst.msk [vmem:[#allocation2] sm:$0xff] %vm393, %v391
  %395 = vrot.lane.b32.xlu0 %v164, 94
  %v396 = vpop.permute.xlu0 %395
  %398 = vxpose.xlu0.b32.start [1/16] %v396, 128
  %399 = vxpose.xlu0.b32.cont [2/16] 0.0, 128
  %400 = vxpose.xlu0.b32.cont [3/16] 0.0, 128
  %401 = vxpose.xlu0.b32.cont [4/16] 0.0, 128
  %402 = vxpose.xlu0.b32.cont [5/16] 0.0, 128
  %403 = vxpose.xlu0.b32.cont [6/16] 0.0, 128
  %404 = vxpose.xlu0.b32.cont [7/16] 0.0, 128
  %405 = vxpose.xlu0.b32.cont [8/16] 0.0, 128
  %406 = vxpose.xlu0.b32.cont [9/16] 0.0, 128
  %407 = vxpose.xlu0.b32.cont [10/16] 0.0, 128
  %408 = vxpose.xlu0.b32.cont [11/16] 0.0, 128
  %409 = vxpose.xlu0.b32.cont [12/16] 0.0, 128
  %410 = vxpose.xlu0.b32.cont [13/16] 0.0, 128
  %411 = vxpose.xlu0.b32.cont [14/16] 0.0, 128
  %412 = vxpose.xlu0.b32.cont [15/16] 0.0, 128
  %413 = vxpose.xlu0.b32.end [16/16] 0.0, 128
  %v414 = vpop.trf.xlu0
  %v415 = vpop.trf.xlu0
  %v416 = vpop.trf.xlu0
  %v417 = vpop.trf.xlu0
  %v418 = vpop.trf.xlu0
  %v419 = vpop.trf.xlu0
  %v420 = vpop.trf.xlu0
  %v421 = vpop.trf.xlu0
  %v422 = vpop.trf.xlu0
  %v423 = vpop.trf.xlu0
  %v424 = vpop.trf.xlu0
  %v425 = vpop.trf.xlu0
  %v426 = vpop.trf.xlu0
  %v427 = vpop.trf.xlu0
  %v428 = vpop.trf.xlu0
  %v429 = vpop.trf.xlu0
  %430 = vset.pattern.permute.xlu0 38
  %431 = vperm.xlu0 %430, %v164
  %v432 = vpop.permute.xlu0 %431
  %v434 = vlaneseq
  %v435 = vshrl.u32 %v434, 7
  %v436 = vsub.s32 0, %v435
  %v437 = vrot.slane %v414, %v436
  %v438 = vadd.f32 %v432, %v437
  %vm439 = vcmp.gt.f32.partialorder %v438, 0.0
  %v440 = vmul.f32 %v438, 0.2
  %v441 = vsel %vm439, %v438, %v440
  %v442 = vadd.f32 %v441, %v39
  %v443 = vsel %vm218, %v442, -inf
  %444 = vmax.xlane.f32.xlu0 %v443
  %v445 = vpop.xlane.xlu0 %444
  %v446 = vsub.f32 %v442, %v445
  %v447 = vmul.f32 %v446, 1.442695
  %v448 = vpow.pop %v447
  %v449 = vsel %vm218, %v448, 0.0
  %450 = vadd.xlane.f32.xlu0 %v449
  %v451 = vpop.xlane.xlu0 %450
  %v452 = vrcp.pop %v451
  %v453 = vmul.f32 %v448, %v452
  %v454 = vpack.c.bf16 %v453, %v453
  %455 = vrot.lane.b32.xlu0 %v231, 112
  %v456 = vpop.permute.xlu0 %455
  %v458 = vsel %vm218, %v454, 0
  %v461 = vsel %vm235, %v456, 0
  %463 = vmatprep.subr.bf16.mxu0 0
  %464 = vmatpush1.bf16.msra.mxu0 0
  %465 = vmatprep.subr.bf16.mxu0 0
  %466 = vmatpush1.bf16.msra.mxu0 0
  %467 = vmatprep.subr.bf16.mxu0 0
  %468 = vmatpush1.bf16.msra.mxu0 0
  %469 = vmatprep.subr.bf16.mxu0 0
  %470 = vmatpush1.bf16.msra.mxu0 0
  %471 = vmatprep.subr.bf16.mxu0 0
  %472 = vmatpush1.bf16.msra.mxu0 0
  %473 = vmatprep.subr.bf16.mxu0 0
  %474 = vmatpush1.bf16.msra.mxu0 0
  %475 = vmatprep.subr.bf16.mxu0 0
  %476 = vmatpush1.bf16.msra.mxu0 0
  %477 = vmatprep.subr.bf16.mxu0 0
  %478 = vmatpush1.bf16.msra.mxu0 %v461
  %479 = vmatprep.subr.bf16.mxu0 0
  %480 = vmatpush2.bf16.msra.mxu0 0
  %481 = vmatprep.subr.bf16.mxu0 0
  %482 = vmatpush2.bf16.msra.mxu0 0
  %483 = vmatprep.subr.bf16.mxu0 0
  %484 = vmatpush2.bf16.msra.mxu0 0
  %485 = vmatprep.subr.bf16.mxu0 0
  %486 = vmatpush2.bf16.msra.mxu0 0
  %487 = vmatprep.subr.bf16.mxu0 0
  %488 = vmatpush2.bf16.msra.mxu0 0
  %489 = vmatprep.subr.bf16.mxu0 0
  %490 = vmatpush2.bf16.msra.mxu0 0
  %491 = vmatprep.subr.bf16.mxu0 0
  %492 = vmatpush2.bf16.msra.mxu0 0
  %493 = vmatprep.subr.bf16.mxu0 0
  %494 = vmatpush2.bf16.msra.mxu0 0
  %495 = vmatprep.mubr.bf16.mxu0 0
  %496 = vmatmul.mubr.bf16.gmra.mxu0 %v458
  %v497 = vpop.f32.mrf.mxu0
  %v498 = vadd.f32 0.0, %v497
  %v499 = vpop.f32.mrf.mxu0
  %v500 = vpop.f32.mrf.mxu0
  %v501 = vpop.f32.mrf.mxu0
  %502 = vdwg.mxu0
  %504 = vrot.lane.b32.xlu0 %v498, 16
  %v505 = vpop.permute.xlu0 %504
  %vm507 = vcmask 195712
  %508 = vst.msk [vmem:[#allocation2] sm:$0xff] %vm507, %v505
  %509 = vrot.lane.b32.xlu0 %v164, 93
  %v510 = vpop.permute.xlu0 %509
  %512 = vxpose.xlu0.b32.start [1/16] %v510, 128
  %513 = vxpose.xlu0.b32.cont [2/16] 0.0, 128
  %514 = vxpose.xlu0.b32.cont [3/16] 0.0, 128
  %515 = vxpose.xlu0.b32.cont [4/16] 0.0, 128
  %516 = vxpose.xlu0.b32.cont [5/16] 0.0, 128
  %517 = vxpose.xlu0.b32.cont [6/16] 0.0, 128
  %518 = vxpose.xlu0.b32.cont [7/16] 0.0, 128
  %519 = vxpose.xlu0.b32.cont [8/16] 0.0, 128
  %520 = vxpose.xlu0.b32.cont [9/16] 0.0, 128
  %521 = vxpose.xlu0.b32.cont [10/16] 0.0, 128
  %522 = vxpose.xlu0.b32.cont [11/16] 0.0, 128
  %523 = vxpose.xlu0.b32.cont [12/16] 0.0, 128
  %524 = vxpose.xlu0.b32.cont [13/16] 0.0, 128
  %525 = vxpose.xlu0.b32.cont [14/16] 0.0, 128
  %526 = vxpose.xlu0.b32.cont [15/16] 0.0, 128
  %527 = vxpose.xlu0.b32.end [16/16] 0.0, 128
  %v528 = vpop.trf.xlu0
  %v529 = vpop.trf.xlu0
  %v530 = vpop.trf.xlu0
  %v531 = vpop.trf.xlu0
  %v532 = vpop.trf.xlu0
  %v533 = vpop.trf.xlu0
  %v534 = vpop.trf.xlu0
  %v535 = vpop.trf.xlu0
  %v536 = vpop.trf.xlu0
  %v537 = vpop.trf.xlu0
  %v538 = vpop.trf.xlu0
  %v539 = vpop.trf.xlu0
  %v540 = vpop.trf.xlu0
  %v541 = vpop.trf.xlu0
  %v542 = vpop.trf.xlu0
  %v543 = vpop.trf.xlu0
  %544 = vset.pattern.permute.xlu0 39
  %545 = vperm.xlu0 %544, %v164
  %v546 = vpop.permute.xlu0 %545
  %v548 = vlaneseq
  %v549 = vshrl.u32 %v548, 7
  %v550 = vsub.s32 0, %v549
  %v551 = vrot.slane %v528, %v550
  %v552 = vadd.f32 %v546, %v551
  %vm553 = vcmp.gt.f32.partialorder %v552, 0.0
  %v554 = vmul.f32 %v552, 0.2
  %v555 = vsel %vm553, %v552, %v554
  %v556 = vadd.f32 %v555, %v39
  %v557 = vsel %vm218, %v556, -inf
  %558 = vmax.xlane.f32.xlu0 %v557
  %v559 = vpop.xlane.xlu0 %558
  %v560 = vsub.f32 %v556, %v559
  %v561 = vmul.f32 %v560, 1.442695
  %v562 = vpow.pop %v561
  %v563 = vsel %vm218, %v562, 0.0
  %564 = vadd.xlane.f32.xlu0 %v563
  %v565 = vpop.xlane.xlu0 %564
  %v566 = vrcp.pop %v565
  %v567 = vmul.f32 %v562, %v566
  %v568 = vpack.c.bf16 %v567, %v567
  %569 = vrot.lane.b32.xlu0 %v231, 104
  %v570 = vpop.permute.xlu0 %569
  %v572 = vsel %vm218, %v568, 0
  %v575 = vsel %vm235, %v570, 0
  %577 = vmatprep.subr.bf16.mxu0 0
  %578 = vmatpush1.bf16.msra.mxu0 0
  %579 = vmatprep.subr.bf16.mxu0 0
  %580 = vmatpush1.bf16.msra.mxu0 0
  %581 = vmatprep.subr.bf16.mxu0 0
  %582 = vmatpush1.bf16.msra.mxu0 0
  %583 = vmatprep.subr.bf16.mxu0 0
  %584 = vmatpush1.bf16.msra.mxu0 0
  %585 = vmatprep.subr.bf16.mxu0 0
  %586 = vmatpush1.bf16.msra.mxu0 0
  %587 = vmatprep.subr.bf16.mxu0 0
  %588 = vmatpush1.bf16.msra.mxu0 0
  %589 = vmatprep.subr.bf16.mxu0 0
  %590 = vmatpush1.bf16.msra.mxu0 0
  %591 = vmatprep.subr.bf16.mxu0 0
  %592 = vmatpush1.bf16.msra.mxu0 %v575
  %593 = vmatprep.subr.bf16.mxu0 0
  %594 = vmatpush2.bf16.msra.mxu0 0
  %595 = vmatprep.subr.bf16.mxu0 0
  %596 = vmatpush2.bf16.msra.mxu0 0
  %597 = vmatprep.subr.bf16.mxu0 0
  %598 = vmatpush2.bf16.msra.mxu0 0
  %599 = vmatprep.subr.bf16.mxu0 0
  %600 = vmatpush2.bf16.msra.mxu0 0
  %601 = vmatprep.subr.bf16.mxu0 0
  %602 = vmatpush2.bf16.msra.mxu0 0
  %603 = vmatprep.subr.bf16.mxu0 0
  %604 = vmatpush2.bf16.msra.mxu0 0
  %605 = vmatprep.subr.bf16.mxu0 0
  %606 = vmatpush2.bf16.msra.mxu0 0
  %607 = vmatprep.subr.bf16.mxu0 0
  %608 = vmatpush2.bf16.msra.mxu0 0
  %609 = vmatprep.mubr.bf16.mxu0 0
  %610 = vmatmul.mubr.bf16.gmra.mxu0 %v572
  %v611 = vpop.f32.mrf.mxu0
  %v612 = vadd.f32 0.0, %v611
  %v613 = vpop.f32.mrf.mxu0
  %v614 = vpop.f32.mrf.mxu0
  %v615 = vpop.f32.mrf.mxu0
  %616 = vdwg.mxu0
  %618 = vrot.lane.b32.xlu0 %v612, 24
  %v619 = vpop.permute.xlu0 %618
  %vm621 = vcmask 261312
  %622 = vst.msk [vmem:[#allocation2] sm:$0xff] %vm621, %v619
  %v623 = vld [vmem:[#allocation2] sm:$0xff]
  %v624 = vld [vmem:[%s6] sm:$0x1]
  %v626 = vlaneseq
  %v627 = vshrl.u32 %v626, 7
  %v628 = vsub.s32 0, %v627
  %v629 = vrot.slane %v624, %v628
  %v631 = vadd.f32 %v623, %v629
  %v632 = vpack.c.bf16 %v631, %v631
  %v633 = vld [vmem:[%s7] sm:$0xf]
  %v634 = vld [vmem:[%s7 + $0x4] sm:$0xf]
  %v635 = vld [vmem:[%s7 + $0x8] sm:$0xf]
  %v636 = vld [vmem:[%s7 + $0xc] sm:$0xf]
  %v641 = vunpack.c.l.b16 %v633
  %v642 = vunpack.c.l.b16 %v634
  %v643 = vunpack.c.l.b16 %v635
  %v644 = vunpack.c.l.b16 %v636
  %v645 = vpack.c.b16 %v642, %v641
  %v646 = vpack.c.b16 %v644, %v643
  %v650 = vsel %vm125, %v632, 0
  %652 = vmatprep.subr.bf16.mxu0 0
  %653 = vmatpush1.bf16.msra.mxu0 0
  %654 = vmatprep.subr.bf16.mxu0 0
  %655 = vmatpush1.bf16.msra.mxu0 0
  %656 = vmatprep.subr.bf16.mxu0 0
  %657 = vmatpush1.bf16.msra.mxu0 0
  %658 = vmatprep.subr.bf16.mxu0 0
  %659 = vmatpush1.bf16.msra.mxu0 0
  %660 = vmatprep.subr.bf16.mxu0 0
  %661 = vmatpush1.bf16.msra.mxu0 0
  %662 = vmatprep.subr.bf16.mxu0 0
  %663 = vmatpush1.bf16.msra.mxu0 0
  %664 = vmatprep.subr.bf16.mxu0 0
  %665 = vmatpush1.bf16.msra.mxu0 %v646
  %666 = vmatprep.subr.bf16.mxu0 0
  %667 = vmatpush1.bf16.msra.mxu0 %v645
  %668 = vmatprep.subr.bf16.mxu0 0
  %669 = vmatpush2.bf16.msra.mxu0 0
  %670 = vmatprep.subr.bf16.mxu0 0
  %671 = vmatpush2.bf16.msra.mxu0 0
  %672 = vmatprep.subr.bf16.mxu0 0
  %673 = vmatpush2.bf16.msra.mxu0 0
  %674 = vmatprep.subr.bf16.mxu0 0
  %675 = vmatpush2.bf16.msra.mxu0 0
  %676 = vmatprep.subr.bf16.mxu0 0
  %677 = vmatpush2.bf16.msra.mxu0 0
  %678 = vmatprep.subr.bf16.mxu0 0
  %679 = vmatpush2.bf16.msra.mxu0 0
  %680 = vmatprep.subr.bf16.mxu0 0
  %681 = vmatpush2.bf16.msra.mxu0 0
  %682 = vmatprep.subr.bf16.mxu0 0
  %683 = vmatpush2.bf16.msra.mxu0 0
  %684 = vmatprep.mubr.bf16.mxu0 0
  %685 = vmatmul.mubr.bf16.gmra.mxu0 %v650
  %v686 = vpop.f32.mrf.mxu0
  %v687 = vadd.f32 0.0, %v686
  %v688 = vpop.f32.mrf.mxu0
  %v689 = vpop.f32.mrf.mxu0
  %v690 = vpop.f32.mrf.mxu0
  %691 = vdwg.mxu0
  %693 = vrot.lane.b32.xlu0 %v687, 96
  %v694 = vpop.permute.xlu0 %693
  %696 = vxpose.xlu0.b32.start [1/16] %v694, 128
  %697 = vxpose.xlu0.b32.cont [2/16] 0.0, 128
  %698 = vxpose.xlu0.b32.cont [3/16] 0.0, 128
  %699 = vxpose.xlu0.b32.cont [4/16] 0.0, 128
  %700 = vxpose.xlu0.b32.cont [5/16] 0.0, 128
  %701 = vxpose.xlu0.b32.cont [6/16] 0.0, 128
  %702 = vxpose.xlu0.b32.cont [7/16] 0.0, 128
  %703 = vxpose.xlu0.b32.cont [8/16] 0.0, 128
  %704 = vxpose.xlu0.b32.cont [9/16] 0.0, 128
  %705 = vxpose.xlu0.b32.cont [10/16] 0.0, 128
  %706 = vxpose.xlu0.b32.cont [11/16] 0.0, 128
  %707 = vxpose.xlu0.b32.cont [12/16] 0.0, 128
  %708 = vxpose.xlu0.b32.cont [13/16] 0.0, 128
  %709 = vxpose.xlu0.b32.cont [14/16] 0.0, 128
  %710 = vxpose.xlu0.b32.cont [15/16] 0.0, 128
  %711 = vxpose.xlu0.b32.end [16/16] 0.0, 128
  %v712 = vpop.trf.xlu0
  %v713 = vpop.trf.xlu0
  %v714 = vpop.trf.xlu0
  %v715 = vpop.trf.xlu0
  %v716 = vpop.trf.xlu0
  %v717 = vpop.trf.xlu0
  %v718 = vpop.trf.xlu0
  %v719 = vpop.trf.xlu0
  %v720 = vpop.trf.xlu0
  %v721 = vpop.trf.xlu0
  %v722 = vpop.trf.xlu0
  %v723 = vpop.trf.xlu0
  %v724 = vpop.trf.xlu0
  %v725 = vpop.trf.xlu0
  %v726 = vpop.trf.xlu0
  %v727 = vpop.trf.xlu0
  %728 = vset.pattern.permute.xlu0 33
  %729 = vperm.xlu0 %728, %v687
  %v730 = vpop.permute.xlu0 %729
  %v732 = vlaneseq
  %v733 = vshrl.u32 %v732, 7
  %v734 = vsub.s32 0, %v733
  %v735 = vrot.slane %v712, %v734
  %v736 = vadd.f32 %v730, %v735
  %vm737 = vcmp.gt.f32.partialorder %v736, 0.0
  %v738 = vmul.f32 %v736, 0.2
  %v739 = vsel %vm737, %v736, %v738
  %v740 = vadd.f32 %v739, %v39
  %v741 = vsel %vm218, %v740, -inf
  %742 = vmax.xlane.f32.xlu0 %v741
  %v743 = vpop.xlane.xlu0 %742
  %v744 = vsub.f32 %v740, %v743
  %v745 = vmul.f32 %v744, 1.442695
  %v746 = vpow.pop %v745
  %v747 = vsel %vm218, %v746, 0.0
  %748 = vadd.xlane.f32.xlu0 %v747
  %v749 = vpop.xlane.xlu0 %748
  %v750 = vrcp.pop %v749
  %v751 = vmul.f32 %v746, %v750
  %v752 = vpack.c.bf16 %v751, %v751
  %v753 = vpack.c.bf16 %v687, %v687
  %v754 = vld [vmem:[%s8] sm:$0x1]
  %v756 = vlaneseq
  %v757 = vshrl.u32 %v756, 7
  %v758 = vsub.s32 0, %v757
  %v759 = vrot.slane %v754, %v758
  %v762 = vsel %vm218, %v752, 0
  %v765 = vsel %vm235, %v753, 0
  %767 = vmatprep.subr.bf16.mxu0 0
  %768 = vmatpush1.bf16.msra.mxu0 0
  %769 = vmatprep.subr.bf16.mxu0 0
  %770 = vmatpush1.bf16.msra.mxu0 0
  %771 = vmatprep.subr.bf16.mxu0 0
  %772 = vmatpush1.bf16.msra.mxu0 0
  %773 = vmatprep.subr.bf16.mxu0 0
  %774 = vmatpush1.bf16.msra.mxu0 0
  %775 = vmatprep.subr.bf16.mxu0 0
  %776 = vmatpush1.bf16.msra.mxu0 0
  %777 = vmatprep.subr.bf16.mxu0 0
  %778 = vmatpush1.bf16.msra.mxu0 0
  %779 = vmatprep.subr.bf16.mxu0 0
  %780 = vmatpush1.bf16.msra.mxu0 0
  %781 = vmatprep.subr.bf16.mxu0 0
  %782 = vmatpush1.bf16.msra.mxu0 %v765
  %783 = vmatprep.subr.bf16.mxu0 0
  %784 = vmatpush2.bf16.msra.mxu0 0
  %785 = vmatprep.subr.bf16.mxu0 0
  %786 = vmatpush2.bf16.msra.mxu0 0
  %787 = vmatprep.subr.bf16.mxu0 0
  %788 = vmatpush2.bf16.msra.mxu0 0
  %789 = vmatprep.subr.bf16.mxu0 0
  %790 = vmatpush2.bf16.msra.mxu0 0
  %791 = vmatprep.subr.bf16.mxu0 0
  %792 = vmatpush2.bf16.msra.mxu0 0
  %793 = vmatprep.subr.bf16.mxu0 0
  %794 = vmatpush2.bf16.msra.mxu0 0
  %795 = vmatprep.subr.bf16.mxu0 0
  %796 = vmatpush2.bf16.msra.mxu0 0
  %797 = vmatprep.subr.bf16.mxu0 0
  %798 = vmatpush2.bf16.msra.mxu0 0
  %799 = vmatprep.mubr.bf16.mxu0 0
  %800 = vmatmul.mubr.bf16.gmra.mxu0 %v762
  %v801 = vpop.f32.mrf.mxu0
  %v802 = vadd.f32 %v759, %v801
  %v803 = vpop.f32.mrf.mxu0
  %v804 = vpop.f32.mrf.mxu0
  %v805 = vpop.f32.mrf.mxu0
  %806 = vdwg.mxu0
  %v807 = vpack.c.bf16 %v802, %v802
  %v809 = vlaneseq
  %v810 = vshrl.u32 %v809, 7
  %v811 = vsub.s32 0, %v810
  %v812 = vrot.slane %v47, %v811
  %v818 = vunpack.c.l.b16 %v43
  %v819 = vunpack.c.l.b16 %v44
  %v820 = vunpack.c.l.b16 %v45
  %v821 = vunpack.c.l.b16 %v46
  %v822 = vpack.c.b16 %v819, %v818
  %v823 = vpack.c.b16 %v821, %v820
  %v827 = vsel %vm125, %v807, 0
  %829 = vmatprep.subr.bf16.mxu0 0
  %830 = vmatpush1.bf16.msra.mxu0 0
  %831 = vmatprep.subr.bf16.mxu0 0
  %832 = vmatpush1.bf16.msra.mxu0 0
  %833 = vmatprep.subr.bf16.mxu0 0
  %834 = vmatpush1.bf16.msra.mxu0 0
  %835 = vmatprep.subr.bf16.mxu0 0
  %836 = vmatpush1.bf16.msra.mxu0 0
  %837 = vmatprep.subr.bf16.mxu0 0
  %838 = vmatpush1.bf16.msra.mxu0 0
  %839 = vmatprep.subr.bf16.mxu0 0
  %840 = vmatpush1.bf16.msra.mxu0 0
  %841 = vmatprep.subr.bf16.mxu0 0
  %842 = vmatpush1.bf16.msra.mxu0 %v823
  %843 = vmatprep.subr.bf16.mxu0 0
  %844 = vmatpush1.bf16.msra.mxu0 %v822
  %845 = vmatprep.subr.bf16.mxu0 0
  %846 = vmatpush2.bf16.msra.mxu0 0
  %847 = vmatprep.subr.bf16.mxu0 0
  %848 = vmatpush2.bf16.msra.mxu0 0
  %849 = vmatprep.subr.bf16.mxu0 0
  %850 = vmatpush2.bf16.msra.mxu0 0
  %851 = vmatprep.subr.bf16.mxu0 0
  %852 = vmatpush2.bf16.msra.mxu0 0
  %853 = vmatprep.subr.bf16.mxu0 0
  %854 = vmatpush2.bf16.msra.mxu0 0
  %855 = vmatprep.subr.bf16.mxu0 0
  %856 = vmatpush2.bf16.msra.mxu0 0
  %857 = vmatprep.subr.bf16.mxu0 0
  %858 = vmatpush2.bf16.msra.mxu0 0
  %859 = vmatprep.subr.bf16.mxu0 0
  %860 = vmatpush2.bf16.msra.mxu0 0
  %861 = vmatprep.mubr.bf16.mxu0 0
  %862 = vmatmul.mubr.bf16.gmra.mxu0 %v827
  %v863 = vpop.f32.mrf.mxu0
  %v864 = vadd.f32 %v812, %v863
  %v865 = vpop.f32.mrf.mxu0
  %v866 = vpop.f32.mrf.mxu0
  %v867 = vpop.f32.mrf.mxu0
  %868 = vdwg.mxu0
  %v869 = vld [vmem:[%s1] sm:$0xf]
  %v871 = vsel %vm61, %v869, 0
  %873 = vmatprep.subr.bf16.mxu0 0
  %874 = vmatpush1.bf16.msra.mxu0 0
  %875 = vmatprep.subr.bf16.mxu0 0
  %876 = vmatpush1.bf16.msra.mxu0 0
  %877 = vmatprep.subr.bf16.mxu0 0
  %878 = vmatpush1.bf16.msra.mxu0 0
  %879 = vmatprep.subr.bf16.mxu0 0
  %880 = vmatpush1.bf16.msra.mxu0 0
  %881 = vmatprep.subr.bf16.mxu0 0
  %882 = vmatpush1.bf16.msra.mxu0 0
  %883 = vmatprep.subr.bf16.mxu0 0
  %884 = vmatpush1.bf16.msra.mxu0 0
  %885 = vmatprep.subr.bf16.mxu0 0
  %886 = vmatpush1.bf16.msra.mxu0 0
  %887 = vmatprep.subr.bf16.mxu0 0
  %888 = vmatpush1.bf16.msra.mxu0 %v59
  %889 = vmatprep.subr.bf16.mxu0 0
  %890 = vmatpush2.bf16.msra.mxu0 0
  %891 = vmatprep.subr.bf16.mxu0 0
  %892 = vmatpush2.bf16.msra.mxu0 0
  %893 = vmatprep.subr.bf16.mxu0 0
  %894 = vmatpush2.bf16.msra.mxu0 0
  %895 = vmatprep.subr.bf16.mxu0 0
  %896 = vmatpush2.bf16.msra.mxu0 0
  %897 = vmatprep.subr.bf16.mxu0 0
  %898 = vmatpush2.bf16.msra.mxu0 0
  %899 = vmatprep.subr.bf16.mxu0 0
  %900 = vmatpush2.bf16.msra.mxu0 0
  %901 = vmatprep.subr.bf16.mxu0 0
  %902 = vmatpush2.bf16.msra.mxu0 0
  %903 = vmatprep.subr.bf16.mxu0 0
  %904 = vmatpush2.bf16.msra.mxu0 0
  %905 = vmatprep.mubr.bf16.mxu0 0
  %906 = vmatmul.mubr.bf16.gmra.mxu0 %v871
  %v907 = vpop.f32.mrf.mxu0
  %v908 = vadd.f32 %v53, %v907
  %v909 = vpop.f32.mrf.mxu0
  %v910 = vpop.f32.mrf.mxu0
  %v911 = vpop.f32.mrf.mxu0
  %912 = vdwg.mxu0
  %vm913 = vcmp.gt.f32.partialorder %v908, 0.0
  %v914 = vmul.f32 %v908, 0.01
  %v915 = vsel %vm913, %v908, %v914
  %v916 = vpack.c.bf16 %v915, %v915
  %v918 = vsel %vm125, %v916, 0
  %920 = vmatprep.subr.bf16.mxu0 0
  %921 = vmatpush1.bf16.msra.mxu0 0
  %922 = vmatprep.subr.bf16.mxu0 0
  %923 = vmatpush1.bf16.msra.mxu0 0
  %924 = vmatprep.subr.bf16.mxu0 0
  %925 = vmatpush1.bf16.msra.mxu0 0
  %926 = vmatprep.subr.bf16.mxu0 0
  %927 = vmatpush1.bf16.msra.mxu0 0
  %928 = vmatprep.subr.bf16.mxu0 0
  %929 = vmatpush1.bf16.msra.mxu0 0
  %930 = vmatprep.subr.bf16.mxu0 0
  %931 = vmatpush1.bf16.msra.mxu0 0
  %932 = vmatprep.subr.bf16.mxu0 0
  %933 = vmatpush1.bf16.msra.mxu0 %v823
  %934 = vmatprep.subr.bf16.mxu0 0
  %935 = vmatpush1.bf16.msra.mxu0 %v822
  %936 = vmatprep.subr.bf16.mxu0 0
  %937 = vmatpush2.bf16.msra.mxu0 0
  %938 = vmatprep.subr.bf16.mxu0 0
  %939 = vmatpush2.bf16.msra.mxu0 0
  %940 = vmatprep.subr.bf16.mxu0 0
  %941 = vmatpush2.bf16.msra.mxu0 0
  %942 = vmatprep.subr.bf16.mxu0 0
  %943 = vmatpush2.bf16.msra.mxu0 0
  %944 = vmatprep.subr.bf16.mxu0 0
  %945 = vmatpush2.bf16.msra.mxu0 0
  %946 = vmatprep.subr.bf16.mxu0 0
  %947 = vmatpush2.bf16.msra.mxu0 0
  %948 = vmatprep.subr.bf16.mxu0 0
  %949 = vmatpush2.bf16.msra.mxu0 0
  %950 = vmatprep.subr.bf16.mxu0 0
  %951 = vmatpush2.bf16.msra.mxu0 0
  %952 = vmatprep.mubr.bf16.mxu0 0
  %953 = vmatmul.mubr.bf16.gmra.mxu0 %v918
  %v954 = vpop.f32.mrf.mxu0
  %v955 = vadd.f32 %v812, %v954
  %v956 = vpop.f32.mrf.mxu0
  %v957 = vpop.f32.mrf.mxu0
  %v958 = vpop.f32.mrf.mxu0
  %959 = vdwg.mxu0
  %v960 = vmul.f32 %v864, %v955
  %961 = vst [vmem:[%s11] sm:$0xff] %v960
  // Predicated region
  $region46: #{gat_forward.1} parent=0 // pred_check
    _
  $region47: #{gat_forward.1} parent=0 // pred_check_branch
    %963 = sbr.rel (0) target = $region49
  $region48: #{gat_forward.1} parent=0 // pred_region
    _
  $region49: #{gat_forward.1} parent=0 // pred_fallthru
    _
  // Predicated region
  $region50: #{gat_forward.1} parent=0 // pred_check
    _
  $region51: #{gat_forward.1} parent=0 // pred_check_branch
    %965 = sbr.rel (0) target = $region53
  $region52: #{gat_forward.1} parent=0 // pred_region
    _
  $region53: #{gat_forward.1} parent=0 // pred_fallthru
    _

</llo_original>
